<compile_context>
chip_gen: v7x
topology: tpu7x:2x2x1
jax: 0.10.0
libtpu: 0.0.40
codegen_flags: <defaults>
</compile_context>

<pallas_src>
import functools

import jax
import jax.numpy as jnp
import numpy as np
from jax.experimental import pallas as pl
from jax.experimental.pallas import tpu as pltpu

NEG_INF = -1e9
LN_EPS = 1e-5
LEAKY_SLOPE = 0.2
SC = 128  # lane-padded width of the folded score column block


def _elu(v):
    return jnp.where(v > 0, v, jnp.expm1(jnp.minimum(v, 0.0)))


def _layernorm(v, gamma, beta):
    mu = jnp.mean(v, axis=-1, keepdims=True)
    var = jnp.mean((v - mu) ** 2, axis=-1, keepdims=True)
    return (v - mu) * jax.lax.rsqrt(var + LN_EPS) * gamma + beta


def _compiler_params():
    """Row axis is parallel (megacore / v7x); VMEM limit derived per generation."""
    try:
        phys = int(getattr(pltpu.get_tpu_info(), "vmem_capacity_bytes", 128 * 2**20))
    except Exception:
        phys = 64 * 2**20
    limit = max(32 * 2**20, min(100 * 2**20, phys * 3 // 4))
    return pltpu.CompilerParams(dimension_semantics=("parallel",),
                                vmem_limit_bytes=limit)


# --------------------------- kernel 1: fused matmul -------------------------
def _prep_kernel(feat_w, x_ref, w_ref, feat_ref, aux_ref):
    """[TM,CIN]@[CIN, H*O + SC (+O)] -> features (bf16) | scores+identity (f32)."""
    t = jnp.dot(x_ref[...], w_ref[...], preferred_element_type=jnp.float32)
    feat_ref[...] = t[:, :feat_w].astype(jnp.bfloat16)
    aux_ref[...] = t[:, feat_w:]


# --------------------- kernel 2: GAT layer 1 + LN + ELU + matmul ------------
def _attn1_kernel(heads, out_dim, src_t_ref, dst_ref, xh_ref, adj_ref,
                  b_ref, g_ref, be_ref, w2_ref, xh2_ref, sc2_ref, acc_ref):
    # Head-invariant additive mask, built once per row tile from int8 adjacency.
    neg_bias = jnp.where(adj_ref[...].astype(jnp.float32) > 0.0, 0.0, NEG_INF)

    for h in range(heads):
        # e[i, j] = leaky_relu(a_dst . xh[i] + a_src . xh[j])
        e = dst_ref[:, h:h + 1] + src_t_ref[h:h + 1, :]            # [TM, N]
        e = jnp.maximum(e, LEAKY_SLOPE * e) + neg_bias
        m = jnp.max(e, axis=-1, keepdims=True)
        p = jnp.exp(e - m)                                         # masked -> exactly 0
        inv = pl.reciprocal(jnp.sum(p, axis=-1, keepdims=True))    # exact
        pv = jnp.dot(p.astype(jnp.bfloat16),                       # MXU in bf16
                     xh_ref[:, h * out_dim:(h + 1) * out_dim],
                     preferred_element_type=jnp.float32)           # [TM, O]
        # post-matmul normalization (row scaling commutes with the matmul)
        acc_ref[:, h * out_dim:(h + 1) * out_dim] = pv * inv

    h1 = acc_ref[...] + b_ref[...]
    h1 = _elu(_layernorm(h1, g_ref[...], be_ref[...]))
    # dropout: identity (eval mode)

    # layer-2 features + scores from one folded matmul, emitted row-tiled.
    t2 = jnp.dot(h1.astype(jnp.bfloat16), w2_ref[...],
                 preferred_element_type=jnp.float32)               # [TM, O + SC]
    xh2_ref[...] = t2[:, :out_dim].astype(jnp.bfloat16)
    sc2_ref[...] = t2[:, out_dim:]


# ---------------- kernel 3: GAT layer 2 + LN + residual + ELU ---------------
def _attn2_kernel(src_t_ref, dst_ref, xh2_ref, adj_ref, ident_ref,
                  b_ref, g_ref, be_ref, out_ref):
    neg_bias = jnp.where(adj_ref[...].astype(jnp.float32) > 0.0, 0.0, NEG_INF)
    e = dst_ref[...] + src_t_ref[...]                              # [TM, N]
    e = jnp.maximum(e, LEAKY_SLOPE * e) + neg_bias
    m = jnp.max(e, axis=-1, keepdims=True)
    p = jnp.exp(e - m)
    inv = pl.reciprocal(jnp.sum(p, axis=-1, keepdims=True))
    h2 = jnp.dot(p.astype(jnp.bfloat16), xh2_ref[...],
                 preferred_element_type=jnp.float32) * inv + b_ref[...]
    h2 = _layernorm(h2, g_ref[...], be_ref[...])
    out_ref[...] = _elu(h2 + ident_ref[...])


# --------------------------------- wrapper ----------------------------------
def dynamic_gat_block(x, adj, params, *, heads, out_dim, row_tile=128):
    N, cin = x.shape
    hdim = heads * out_dim
    has_proj = cin != out_dim
    assert out_dim % 128 == 0, "out_dim must be a multiple of 128 (lane-dense stores)"
    tm = min(row_tile, N)
    assert N % tm == 0, "num_nodes must be divisible by the row tile"
    n_tiles = N // tm

    f32, bf16 = jnp.float32, jnp.bfloat16
    cparams = _compiler_params()
    vmem_full = pl.BlockSpec(memory_space=pltpu.MemorySpace.VMEM)  # whole array, single copy

    # ---- fold attention vectors (+ residual projection) into the weights ----
    acat1 = jnp.zeros((hdim, 2 * heads), f32)       # block-diag per-head attn vectors
    for h in range(heads):
        acat1 = acat1.at[h * out_dim:(h + 1) * out_dim, h].set(params["asrc1"][:, h])
        acat1 = acat1.at[h * out_dim:(h + 1) * out_dim, heads + h].set(params["adst1"][:, h])
    sc1_w = jnp.pad(params["w1"] @ acat1, ((0, 0), (0, SC - 2 * heads)))     # [cin, 128]
    blocks = [params["w1"], sc1_w] + ([params["wp"]] if has_proj else [])
    w1aug = jnp.concatenate(blocks, axis=1).astype(bf16)     # [cin, hdim + SC (+ O)]

    acat2 = jnp.concatenate([params["asrc2"], params["adst2"]], axis=1)      # [O, 2]
    sc2_w = jnp.pad(params["w2"] @ acat2, ((0, 0), (0, SC - 2)))             # [hdim, 128]
    w2aug = jnp.concatenate([params["w2"], sc2_w], axis=1).astype(bf16)      # [hdim, O + SC]

    aux_w = SC + (out_dim if has_proj else 0)
    adj_i8 = (adj > 0).astype(jnp.int8)   # mask only; 4x smaller DMA / VMEM resident

    # ---- call 1: features / scores / identity from one MXU pass ----
    xh1, aux1 = pl.pallas_call(
        functools.partial(_prep_kernel, hdim),
        out_shape=(jax.ShapeDtypeStruct((N, hdim), bf16),
                   jax.ShapeDtypeStruct((N, aux_w), f32)),
        grid=(n_tiles,),
        in_specs=[pl.BlockSpec((tm, cin), lambda i: (i, 0)),
                  vmem_full],
        out_specs=(pl.BlockSpec((tm, hdim), lambda i: (i, 0)),
                   pl.BlockSpec((tm, aux_w), lambda i: (i, 0))),
        compiler_params=cparams,
    )(x.astype(bf16), w1aug)

    src1_t = jnp.transpose(aux1[:, :heads])              # [H, N] src scores (layout plumbing)
    dst1 = aux1[:, heads:2 * heads]                      # [N, H] dst scores
    ident = (aux1[:, SC:SC + out_dim] + params["bp"]) if has_proj else x.astype(f32)

    # ---- call 2: GAT layer 1 + LayerNorm + ELU + layer-2 feature matmul ----
    xh2, sc2 = pl.pallas_call(
        functools.partial(_attn1_kernel, heads, out_dim),
        out_shape=(jax.ShapeDtypeStruct((N, out_dim), bf16),
                   jax.ShapeDtypeStruct((N, SC), f32)),
        grid=(n_tiles,),
        in_specs=[vmem_full,                                   # src1_t  [H, N]
                  pl.BlockSpec((tm, heads), lambda i: (i, 0)),  # dst1
                  vmem_full,                                   # xh1     [N, hdim] bf16
                  pl.BlockSpec((tm, N), lambda i: (i, 0)),      # adj row tile (int8)
                  vmem_full, vmem_full, vmem_full,             # b1, g1, be1
                  vmem_full],                                  # w2aug
        out_specs=(pl.BlockSpec((tm, out_dim), lambda i: (i, 0)),
                   pl.BlockSpec((tm, SC), lambda i: (i, 0))),
        scratch_shapes=[pltpu.VMEM((tm, hdim), jnp.float32)],
        compiler_params=cparams,
    )(src1_t, dst1, xh1, adj_i8, params["b1"], params["g1"], params["be1"], w2aug)

    src2_t = jnp.transpose(sc2[:, 0:1])                  # [1, N]
    dst2 = sc2[:, 1:2]                                   # [N, 1]

    # ---- call 3: GAT layer 2 + LayerNorm + residual + ELU ----
    out = pl.pallas_call(
        _attn2_kernel,
        out_shape=jax.ShapeDtypeStruct((N, out_dim), f32),
        grid=(n_tiles,),
        in_specs=[vmem_full,                                   # src2_t [1, N]
                  pl.BlockSpec((tm, 1), lambda i: (i, 0)),      # dst2
                  vmem_full,                                   # xh2 [N, O] bf16
                  pl.BlockSpec((tm, N), lambda i: (i, 0)),      # adj row tile (int8)
                  pl.BlockSpec((tm, out_dim), lambda i: (i, 0)),  # identity
                  vmem_full, vmem_full, vmem_full],            # b2, g2, be2
        out_specs=pl.BlockSpec((tm, out_dim), lambda i: (i, 0)),
        compiler_params=cparams,
    )(src2_t, dst2, xh2, adj_i8, ident, params["b2"], params["g2"], params["be2"])
    return out


# ----------------------------- pure-JAX reference ---------------------------
def _gat_layer_ref(feat, adj, w, a_src, a_dst, bias, heads, out_dim, concat):
    outs = []
    for h in range(heads):
        wh = w[:, h * out_dim:(h + 1) * out_dim]
        xh = feat @ wh
        asc = xh @ a_src[:, h:h + 1]
        ads = xh @ a_dst[:, h:h + 1]
        e = ads + asc.T
        e = jnp.where(e > 0, e, LEAKY_SLOPE * e)
        e = jnp.where(adj > 0, e, NEG_INF)
        m = jnp.max(e, axis=-1, keepdims=True)
        p = jnp.exp(e - m) * adj
        alpha = p / jnp.sum(p, axis=-1, keepdims=True)
        outs.append(alpha @ xh)
    o = jnp.concatenate(outs, axis=-1) if concat else sum(outs) / float(heads)
    return o + bias


def reference(x, adj, params, *, heads, out_dim):
    cin = x.shape[1]
    identity = (x @ params["wp"] + params["bp"]) if cin != out_dim else x
    h1 = _gat_layer_ref(x, adj, params["w1"], params["asrc1"], params["adst1"],
                        params["b1"], heads, out_dim, concat=True)
    h1 = _elu(_layernorm(h1, params["g1"], params["be1"]))
    h2 = _gat_layer_ref(h1, adj, params["w2"], params["asrc2"], params["adst2"],
                        params["b2"], 1, out_dim, concat=False)
    h2 = _layernorm(h2, params["g2"], params["be2"])
    return _elu(h2 + identity)


def _glorot(key, shape):
    s = jnp.sqrt(6.0 / (shape[0] + shape[-1]))
    return jax.random.uniform(key, shape, jnp.float32, -s, s)


if __name__ == "__main__":
    # Lane-dense sizes: COUT = 128, H*O = 512 -> full-lane stores everywhere.
    N, CIN, COUT, HEADS, E = 128, 64, 128, 4, 512

    key = jax.random.PRNGKey(0)
    ks = jax.random.split(key, 12)

    # node features and random edge list [2, E] (row 0 = source, row 1 = target)
    x = jax.random.normal(ks[0], (N, CIN), jnp.float32)
    src = jax.random.randint(ks[1], (E,), 0, N)
    dst = jax.random.randint(ks[2], (E,), 0, N)

    # dense adjacency adj[target, source], with self-loops (GATConv default)
    adj = jnp.zeros((N, N), jnp.float32).at[dst, src].set(1.0)
    adj = jnp.maximum(adj, jnp.eye(N, dtype=jnp.float32))

    params = {
        # gat1: GATConv(CIN, COUT, heads=HEADS, concat=True)
        "w1": _glorot(ks[3], (CIN, HEADS * COUT)),
        "asrc1": _glorot(ks[4], (COUT, HEADS)),
        "adst1": _glorot(ks[5], (COUT, HEADS)),
        "b1": jnp.zeros((1, HEADS * COUT), jnp.float32),
        "g1": jnp.ones((1, HEADS * COUT), jnp.float32),
        "be1": jnp.zeros((1, HEADS * COUT), jnp.float32),
        # gat2: GATConv(HEADS*COUT, COUT, heads=1, concat=False)
        "w2": _glorot(ks[6], (HEADS * COUT, COUT)),
        "asrc2": _glorot(ks[7], (COUT, 1)),
        "adst2": _glorot(ks[8], (COUT, 1)),
        "b2": jnp.zeros((1, COUT), jnp.float32),
        "g2": jnp.ones((1, COUT), jnp.float32),
        "be2": jnp.zeros((1, COUT), jnp.float32),
        # proj: Linear(CIN, COUT)
        "wp": _glorot(ks[9], (CIN, COUT)),
        "bp": 0.01 * jax.random.normal(ks[10], (1, COUT), jnp.float32),
    }

    out = jax.block_until_ready(
        dynamic_gat_block(x, adj, params, heads=HEADS, out_dim=COUT))
    ref = jax.block_until_ready(
        reference(x, adj, params, heads=HEADS, out_dim=COUT))
    # Tolerance accounts for bf16 MXU operands (applied per perf review) vs the
    # f32 reference; two LayerNorms amplify the relative bf16 rounding error.
    np.testing.assert_allclose(np.asarray(out), np.asarray(ref),
                               rtol=2e-2, atol=5e-2)

    print("KERNEL_OK")
</pallas_src>

<mosaic_0001>
module attributes {stable_mosaic.version = 11 : i64} {
  func.func @_prep_kernel(%arg0: i32, %arg1: memref<128x64xbf16, #tpu.memory_space<vmem>>, %arg2: memref<64x768xbf16, #tpu.memory_space<vmem>>, %arg3: memref<128x512xbf16, #tpu.memory_space<vmem>>, %arg4: memref<128x256xf32, #tpu.memory_space<vmem>>) attributes {dimension_semantics = [#tpu.dimension_semantics<parallel>], iteration_bounds = array<i64: 1>, scalar_prefetch = 0 : i64, scratch_operands = 0 : i64, tpu.core_type = #tpu.core_type<tc>, window_params = [{transform_indices = @transform_0, window_bounds = array<i64: 128, 64>}, {pipeline_mode = #tpu.pipeline_mode<synchronous>, transform_indices = @transform_1, window_bounds = array<i64: 64, 768>}, {transform_indices = @transform_2, window_bounds = array<i64: 128, 512>}, {transform_indices = @transform_3, window_bounds = array<i64: 128, 256>}]} {
    %c0 = arith.constant 0 : index
    %c0_0 = arith.constant 0 : index
    %0 = vector.load %arg1[%c0, %c0_0] : memref<128x64xbf16, #tpu.memory_space<vmem>>, vector<128x64xbf16>
    %c0_1 = arith.constant 0 : index
    %c0_2 = arith.constant 0 : index
    %1 = vector.load %arg2[%c0_1, %c0_2] : memref<64x768xbf16, #tpu.memory_space<vmem>>, vector<64x768xbf16>
    %cst = arith.constant dense<0.000000e+00> : vector<128x768xf32>
    %2 = tpu.matmul %0, %1, %cst {dimension_numbers = #tpu.dot_dimension_numbers<[1], [0], [0], [1], [0, 0, 1, 1], [], []>} : vector<128x64xbf16>, vector<64x768xbf16>, vector<128x768xf32> -> vector<128x768xf32>
    %3 = vector.extract_strided_slice %2 {offsets = [0, 0], sizes = [128, 512], strides = [1, 1]} : vector<128x768xf32> to vector<128x512xf32>
    %4 = arith.truncf %3 : vector<128x512xf32> to vector<128x512xbf16>
    %c0_3 = arith.constant 0 : index
    %c0_4 = arith.constant 0 : index
    %5 = vector.load %arg3[%c0_3, %c0_4] : memref<128x512xbf16, #tpu.memory_space<vmem>>, vector<128x512xbf16>
    tpu.vector_store %arg3[%c0_3, %c0_4], %4 {strides = array<i32>} : memref<128x512xbf16, #tpu.memory_space<vmem>>, vector<128x512xbf16>,
    %6 = vector.extract_strided_slice %2 {offsets = [0, 512], sizes = [128, 256], strides = [1, 1]} : vector<128x768xf32> to vector<128x256xf32>
    %c0_5 = arith.constant 0 : index
    %c0_6 = arith.constant 0 : index
    %7 = vector.load %arg4[%c0_5, %c0_6] : memref<128x256xf32, #tpu.memory_space<vmem>>, vector<128x256xf32>
    tpu.vector_store %arg4[%c0_5, %c0_6], %6 {strides = array<i32>} : memref<128x256xf32, #tpu.memory_space<vmem>>, vector<128x256xf32>,
    return
  }
  func.func @transform_0(%arg0: i32) -> (i32, i32) {
    %c0_i32 = arith.constant 0 : i32
    %c0_i32_0 = arith.constant 0 : i32
    return %arg0, %c0_i32 : i32, i32
  }
  func.func @transform_1(%arg0: i32) -> (i32, i32) {
    %c0_i32 = arith.constant 0 : i32
    %c0_i32_0 = arith.constant 0 : i32
    %c0_i32_1 = arith.constant 0 : i32
    return %c0_i32, %c0_i32_0 : i32, i32
  }
  func.func @transform_2(%arg0: i32) -> (i32, i32) {
    %c0_i32 = arith.constant 0 : i32
    %c0_i32_0 = arith.constant 0 : i32
    return %arg0, %c0_i32 : i32, i32
  }
  func.func @transform_3(%arg0: i32) -> (i32, i32) {
    %c0_i32 = arith.constant 0 : i32
    %c0_i32_0 = arith.constant 0 : i32
    return %arg0, %c0_i32 : i32, i32
  }
}

</mosaic_0001>

<llo_original>
// kernel: tpu_custom_call.1
$region0: #{tpu_custom_call.1}
  #allocation0 [shape = 'u32[]', space=smem, size = 0x4, offset = 0x4, fixed_abs, tag = 'smem constant byte address 0x4 - core index']
  #allocation1 [shape = 'u32[144,128]{1,0:T(1,128)}', space=vmem, size = 0x12000, scoped, tag = 'internal scratch']
  %s0 = inlined_call_operand.vmem [shape: bf16[128,64], index: 0, kind: input, shape index: {}]
  %s1 = inlined_call_operand.hbm [shape: bf16[64,768], index: 1, kind: input, shape index: {}]
  %s2 = inlined_call_operand.hbm [shape: bf16[128,512], index: 2, kind: output, shape index: {0}]
  %s3 = inlined_call_operand.hbm [shape: f32[128,256], index: 3, kind: output, shape index: {1}]
  %4 = xla_tuple %s2, %s3
  %s5 = sld [smem:[#allocation0]]
  $region30: #{tpu_custom_call.1} parent=0
    _
  %s7 = ssub.s32 1, %s5
  %s8 = scalar_select 0, %s7, %s5
  $region1: #{tpu_custom_call.1} parent=0
    #allocation2 [shape = 'u8[98304]{0}', space=vmem, size = 0x18000, scoped, tag = 'input window, operand 1, single buffered']
    #allocation3 [shape = 's32[1]{0}', space=sflag, size = 0x4, scoped, tag = 'scoped memory for tpu_custom_call.1']
    #allocation4 [shape = 's32[1]{0}', space=sflag, size = 0x4, scoped, tag = 'scoped memory for tpu_custom_call.1']
    #allocation5 [shape = 'u8[131072]{0}', space=vmem, size = 0x20000, scoped, tag = 'output window, operand 0, single buffered']
    #allocation6 [shape = 'u8[131072]{0}', space=vmem, size = 0x20000, scoped, tag = 'output window, operand 1, single buffered']
    #allocation7 [shape = 's32[1]{0}', space=sflag, size = 0x4, scoped, tag = 'scoped memory for tpu_custom_call.1']
    %9 = vsyncpa [#allocation3], 0
    %10 = vsyncpa [#allocation4], 0
    %11 = vsyncpa [#allocation7], 0
    // Predicated region
    $region2: #{tpu_custom_call.1} parent=1 // pred_check
      _
    $region3: #{tpu_custom_call.1} parent=1 // pred_check_branch
      %13 = sbr.rel (0) target = $region5
    $region4: #{tpu_custom_call.1} parent=1 // pred_region
      _
    $region5: #{tpu_custom_call.1} parent=1 // pred_fallthru
      _
    // Predicated region
    $region6: #{tpu_custom_call.1} parent=1 // pred_check
      _
    $region7: #{tpu_custom_call.1} parent=1 // pred_check_branch
      %15 = sbr.rel (0) target = $region9
    $region8: #{tpu_custom_call.1} parent=1 // pred_region
      %s17 = ssub.s32 3072, 3072
      %18 = vsyncadd [#allocation3], %s17
      %s19 = sshll.u32 [#allocation2], 4
      %s20 = int_to_ptr.vmem [resolvable:$true] %s19
      %25 = dma.hbm_to_vmem [thread:$0]  %s1, 3072, %s20, [#allocation3], 384, 384, 24
    $region9: #{tpu_custom_call.1} parent=1 // pred_fallthru
      _
    // Predicated region
    $region10: #{tpu_custom_call.1} parent=1 // pred_check
      _
    $region11: #{tpu_custom_call.1} parent=1 // pred_check_branch
      %27 = sbr.rel (0) target = $region13
    $region12: #{tpu_custom_call.1} parent=1 // pred_region
      %28 = dma.done [#allocation3], 3072
    $region13: #{tpu_custom_call.1} parent=1 // pred_fallthru
      _
    %v30 = vld [vmem:[%s0] sm:$0xf]
    %v31 = vld [vmem:[%s0 + $0x4] sm:$0xf]
    %v32 = vld [vmem:[%s0 + $0x8] sm:$0xf]
    %v33 = vld [vmem:[%s0 + $0xc] sm:$0xf]
    %v34 = vld [vmem:[%s0 + $0x10] sm:$0xf]
    %v35 = vld [vmem:[%s0 + $0x14] sm:$0xf]
    %v36 = vld [vmem:[%s0 + $0x18] sm:$0xf]
    %v37 = vld [vmem:[%s0 + $0x1c] sm:$0xf]
    %v38 = vld [vmem:[%s0 + $0x20] sm:$0xf]
    %v39 = vld [vmem:[%s0 + $0x24] sm:$0xf]
    %v40 = vld [vmem:[%s0 + $0x28] sm:$0xf]
    %v41 = vld [vmem:[%s0 + $0x2c] sm:$0xf]
    %v42 = vld [vmem:[%s0 + $0x30] sm:$0xf]
    %v43 = vld [vmem:[%s0 + $0x34] sm:$0xf]
    %v44 = vld [vmem:[%s0 + $0x38] sm:$0xf]
    %v45 = vld [vmem:[%s0 + $0x3c] sm:$0xf]
    %v46 = vld [vmem:[#allocation2] sm:$0xff]
    %v47 = vld [vmem:[#allocation2 + $0x8] sm:$0xff]
    %v48 = vld [vmem:[#allocation2 + $0x10] sm:$0xff]
    %v49 = vld [vmem:[#allocation2 + $0x18] sm:$0xff]
    %v50 = vld [vmem:[#allocation2 + $0x20] sm:$0xff]
    %v51 = vld [vmem:[#allocation2 + $0x28] sm:$0xff]
    %v52 = vld [vmem:[#allocation2 + $0x30] sm:$0xff]
    %v53 = vld [vmem:[#allocation2 + $0x38] sm:$0xff]
    %v54 = vld [vmem:[#allocation2 + $0x40] sm:$0xff]
    %v55 = vld [vmem:[#allocation2 + $0x48] sm:$0xff]
    %v56 = vld [vmem:[#allocation2 + $0x50] sm:$0xff]
    %v57 = vld [vmem:[#allocation2 + $0x58] sm:$0xff]
    %v58 = vld [vmem:[#allocation2 + $0x60] sm:$0xff]
    %v59 = vld [vmem:[#allocation2 + $0x68] sm:$0xff]
    %v60 = vld [vmem:[#allocation2 + $0x70] sm:$0xff]
    %v61 = vld [vmem:[#allocation2 + $0x78] sm:$0xff]
    %v62 = vld [vmem:[#allocation2 + $0x80] sm:$0xff]
    %v63 = vld [vmem:[#allocation2 + $0x88] sm:$0xff]
    %v64 = vld [vmem:[#allocation2 + $0x90] sm:$0xff]
    %v65 = vld [vmem:[#allocation2 + $0x98] sm:$0xff]
    %v66 = vld [vmem:[#allocation2 + $0xa0] sm:$0xff]
    %v67 = vld [vmem:[#allocation2 + $0xa8] sm:$0xff]
    %v68 = vld [vmem:[#allocation2 + $0xb0] sm:$0xff]
    %v69 = vld [vmem:[#allocation2 + $0xb8] sm:$0xff]
    %v86 = vunpack.c.l.b16 %v30
    %v87 = vunpack.c.l.b16 %v31
    %v88 = vunpack.c.l.b16 %v32
    %v89 = vunpack.c.l.b16 %v33
    %v90 = vunpack.c.l.b16 %v34
    %v91 = vunpack.c.l.b16 %v35
    %v92 = vunpack.c.l.b16 %v36
    %v93 = vunpack.c.l.b16 %v37
    %v94 = vunpack.c.l.b16 %v38
    %v95 = vunpack.c.l.b16 %v39
    %v96 = vunpack.c.l.b16 %v40
    %v97 = vunpack.c.l.b16 %v41
    %v98 = vunpack.c.l.b16 %v42
    %v99 = vunpack.c.l.b16 %v43
    %v100 = vunpack.c.l.b16 %v44
    %v101 = vunpack.c.l.b16 %v45
    %v102 = vpack.c.b16 %v87, %v86
    %v103 = vpack.c.b16 %v89, %v88
    %v104 = vpack.c.b16 %v91, %v90
    %v105 = vpack.c.b16 %v93, %v92
    %v106 = vpack.c.b16 %v95, %v94
    %v107 = vpack.c.b16 %v97, %v96
    %v108 = vpack.c.b16 %v99, %v98
    %v109 = vpack.c.b16 %v101, %v100
    %v134 = vunpack.c.l.b16 %v46
    %v135 = vunpack.c.h.b16 %v46
    %v136 = vunpack.c.l.b16 %v47
    %v137 = vunpack.c.h.b16 %v47
    %v138 = vunpack.c.l.b16 %v48
    %v139 = vunpack.c.h.b16 %v48
    %v140 = vunpack.c.l.b16 %v49
    %v141 = vunpack.c.h.b16 %v49
    %v142 = vunpack.c.l.b16 %v50
    %v143 = vunpack.c.h.b16 %v50
    %v144 = vunpack.c.l.b16 %v51
    %v145 = vunpack.c.h.b16 %v51
    %v146 = vunpack.c.l.b16 %v52
    %v147 = vunpack.c.h.b16 %v52
    %v148 = vunpack.c.l.b16 %v53
    %v149 = vunpack.c.h.b16 %v53
    %v150 = vunpack.c.l.b16 %v54
    %v151 = vunpack.c.h.b16 %v54
    %v152 = vunpack.c.l.b16 %v55
    %v153 = vunpack.c.h.b16 %v55
    %v154 = vunpack.c.l.b16 %v56
    %v155 = vunpack.c.h.b16 %v56
    %v156 = vunpack.c.l.b16 %v57
    %v157 = vunpack.c.h.b16 %v57
    %v158 = vunpack.c.l.b16 %v58
    %v159 = vunpack.c.h.b16 %v58
    %v160 = vunpack.c.l.b16 %v59
    %v161 = vunpack.c.h.b16 %v59
    %v162 = vunpack.c.l.b16 %v60
    %v163 = vunpack.c.h.b16 %v60
    %v164 = vunpack.c.l.b16 %v61
    %v165 = vunpack.c.h.b16 %v61
    %v166 = vunpack.c.l.b16 %v62
    %v167 = vunpack.c.h.b16 %v62
    %v168 = vunpack.c.l.b16 %v63
    %v169 = vunpack.c.h.b16 %v63
    %v170 = vunpack.c.l.b16 %v64
    %v171 = vunpack.c.h.b16 %v64
    %v172 = vunpack.c.l.b16 %v65
    %v173 = vunpack.c.h.b16 %v65
    %v174 = vunpack.c.l.b16 %v66
    %v175 = vunpack.c.h.b16 %v66
    %v176 = vunpack.c.l.b16 %v67
    %v177 = vunpack.c.h.b16 %v67
    %v178 = vunpack.c.l.b16 %v68
    %v179 = vunpack.c.h.b16 %v68
    %v180 = vunpack.c.l.b16 %v69
    %v181 = vunpack.c.h.b16 %v69
    %v182 = vpack.c.b16 %v140, %v134
    %v183 = vpack.c.b16 %v141, %v135
    %v184 = vpack.c.b16 %v142, %v136
    %v185 = vpack.c.b16 %v143, %v137
    %v186 = vpack.c.b16 %v144, %v138
    %v187 = vpack.c.b16 %v145, %v139
    %v188 = vpack.c.b16 %v152, %v146
    %v189 = vpack.c.b16 %v153, %v147
    %v190 = vpack.c.b16 %v154, %v148
    %v191 = vpack.c.b16 %v155, %v149
    %v192 = vpack.c.b16 %v156, %v150
    %v193 = vpack.c.b16 %v157, %v151
    %v194 = vpack.c.b16 %v164, %v158
    %v195 = vpack.c.b16 %v165, %v159
    %v196 = vpack.c.b16 %v166, %v160
    %v197 = vpack.c.b16 %v167, %v161
    %v198 = vpack.c.b16 %v168, %v162
    %v199 = vpack.c.b16 %v169, %v163
    %v200 = vpack.c.b16 %v176, %v170
    %v201 = vpack.c.b16 %v177, %v171
    %v202 = vpack.c.b16 %v178, %v172
    %v203 = vpack.c.b16 %v179, %v173
    %v204 = vpack.c.b16 %v180, %v174
    %v205 = vpack.c.b16 %v181, %v175
    %vm230 = vcmask 523264
    %v232 = vsel %vm230, %v102, 0
    %v235 = vsel %vm230, %v103, 0
    %v238 = vsel %vm230, %v104, 0
    %v241 = vsel %vm230, %v105, 0
    %v244 = vsel %vm230, %v106, 0
    %v247 = vsel %vm230, %v107, 0
    %v250 = vsel %vm230, %v108, 0
    %v253 = vsel %vm230, %v109, 0
    %255 = vmatprep.subr.bf16.mxu0 %v183
    %256 = vmatpush1.bf16.msra.mxu0 %v182
    %257 = vmatprep.subr.bf16.mxu0 %v189
    %258 = vmatpush1.bf16.msra.mxu0 %v188
    %259 = vmatprep.subr.bf16.mxu0 %v195
    %260 = vmatpush1.bf16.msra.mxu0 %v194
    %261 = vmatprep.subr.bf16.mxu0 %v201
    %262 = vmatpush1.bf16.msra.mxu0 %v200
    %263 = vmatprep.subr.bf16.mxu0 0
    %264 = vmatpush1.bf16.msra.mxu0 0
    %265 = vmatprep.subr.bf16.mxu0 0
    %266 = vmatpush1.bf16.msra.mxu0 0
    %267 = vmatprep.subr.bf16.mxu0 0
    %268 = vmatpush1.bf16.msra.mxu0 0
    %269 = vmatprep.subr.bf16.mxu0 0
    %270 = vmatpush1.bf16.msra.mxu0 0
    %271 = vmatprep.subr.bf16.mxu0 0
    %272 = vmatpush1.bf16.msra.mxu0 0
    %273 = vmatprep.subr.bf16.mxu0 0
    %274 = vmatpush1.bf16.msra.mxu0 0
    %275 = vmatprep.subr.bf16.mxu0 0
    %276 = vmatpush1.bf16.msra.mxu0 0
    %277 = vmatprep.subr.bf16.mxu0 0
    %278 = vmatpush1.bf16.msra.mxu0 0
    %279 = vmatprep.subr.bf16.mxu0 0
    %280 = vmatpush1.bf16.msra.mxu0 0
    %281 = vmatprep.subr.bf16.mxu0 0
    %282 = vmatpush1.bf16.msra.mxu0 0
    %283 = vmatprep.subr.bf16.mxu0 0
    %284 = vmatpush1.bf16.msra.mxu0 0
    %285 = vmatprep.subr.bf16.mxu0 0
    %286 = vmatpush1.bf16.msra.mxu0 0
    %287 = vmatprep.mubr.bf16.mxu0 0
    %288 = vmatmul.mubr.bf16.gmra.mrb[0].mxu0 %v232
    %v289 = vpop.f32.mrb[0].mxu0
    %v290 = vadd.f32 0.0, %v289
    %v291 = vpop.f32.mrb[0].mxu0
    %v292 = vadd.f32 0.0, %v291
    %v293 = vpop.f32.mrb[0].mxu0
    %v294 = vadd.f32 0.0, %v293
    %v295 = vpop.f32.mrb[0].mxu0
    %v296 = vadd.f32 0.0, %v295
    %297 = vmatprep.mubr.bf16.mxu0 0
    %298 = vmatmul.mubr.bf16.gmra.mrb[0].mxu0 %v235
    %v299 = vpop.f32.mrb[0].mxu0
    %v300 = vadd.f32 0.0, %v299
    %v301 = vpop.f32.mrb[0].mxu0
    %v302 = vadd.f32 0.0, %v301
    %v303 = vpop.f32.mrb[0].mxu0
    %v304 = vadd.f32 0.0, %v303
    %v305 = vpop.f32.mrb[0].mxu0
    %v306 = vadd.f32 0.0, %v305
    %307 = vmatprep.mubr.bf16.mxu0 0
    %308 = vmatmul.mubr.bf16.gmra.mrb[0].mxu0 %v238
    %v309 = vpop.f32.mrb[0].mxu0
    %v310 = vadd.f32 0.0, %v309
    %v311 = vpop.f32.mrb[0].mxu0
    %v312 = vadd.f32 0.0, %v311
    %v313 = vpop.f32.mrb[0].mxu0
    %v314 = vadd.f32 0.0, %v313
    %v315 = vpop.f32.mrb[0].mxu0
    %v316 = vadd.f32 0.0, %v315
    %317 = vmatprep.mubr.bf16.mxu0 0
    %318 = vmatmul.mubr.bf16.gmra.mrb[0].mxu0 %v241
    %v319 = vpop.f32.mrb[0].mxu0
    %v320 = vadd.f32 0.0, %v319
    %v321 = vpop.f32.mrb[0].mxu0
    %v322 = vadd.f32 0.0, %v321
    %v323 = vpop.f32.mrb[0].mxu0
    %v324 = vadd.f32 0.0, %v323
    %v325 = vpop.f32.mrb[0].mxu0
    %v326 = vadd.f32 0.0, %v325
    %327 = vmatprep.mubr.bf16.mxu0 0
    %328 = vmatmul.mubr.bf16.gmra.mrb[0].mxu0 %v244
    %v329 = vpop.f32.mrb[0].mxu0
    %v330 = vadd.f32 0.0, %v329
    %v331 = vpop.f32.mrb[0].mxu0
    %v332 = vadd.f32 0.0, %v331
    %v333 = vpop.f32.mrb[0].mxu0
    %v334 = vadd.f32 0.0, %v333
    %v335 = vpop.f32.mrb[0].mxu0
    %v336 = vadd.f32 0.0, %v335
    %337 = vmatprep.mubr.bf16.mxu0 0
    %338 = vmatmul.mubr.bf16.gmra.mrb[0].mxu0 %v247
    %v339 = vpop.f32.mrb[0].mxu0
    %v340 = vadd.f32 0.0, %v339
    %v341 = vpop.f32.mrb[0].mxu0
    %v342 = vadd.f32 0.0, %v341
    %v343 = vpop.f32.mrb[0].mxu0
    %v344 = vadd.f32 0.0, %v343
    %v345 = vpop.f32.mrb[0].mxu0
    %v346 = vadd.f32 0.0, %v345
    %347 = vmatprep.mubr.bf16.mxu0 0
    %348 = vmatmul.mubr.bf16.gmra.mrb[0].mxu0 %v250
    %v349 = vpop.f32.mrb[0].mxu0
    %v350 = vadd.f32 0.0, %v349
    %v351 = vpop.f32.mrb[0].mxu0
    %v352 = vadd.f32 0.0, %v351
    %v353 = vpop.f32.mrb[0].mxu0
    %v354 = vadd.f32 0.0, %v353
    %v355 = vpop.f32.mrb[0].mxu0
    %v356 = vadd.f32 0.0, %v355
    %357 = vmatprep.mubr.bf16.mxu0 0
    %358 = vmatmul.mubr.bf16.gmra.mrb[0].mxu0 %v253
    %v359 = vpop.f32.mrb[0].mxu0
    %v360 = vadd.f32 0.0, %v359
    %v361 = vpop.f32.mrb[0].mxu0
    %v362 = vadd.f32 0.0, %v361
    %v363 = vpop.f32.mrb[0].mxu0
    %v364 = vadd.f32 0.0, %v363
    %v365 = vpop.f32.mrb[0].mxu0
    %v366 = vadd.f32 0.0, %v365
    %367 = vdwg.mxu0
    %368 = vmatprep.subr.bf16.mxu0 %v185
    %369 = vmatpush1.bf16.msra.mxu0 %v184
    %370 = vmatprep.subr.bf16.mxu0 %v191
    %371 = vmatpush1.bf16.msra.mxu0 %v190
    %372 = vmatprep.subr.bf16.mxu0 %v197
    %373 = vmatpush1.bf16.msra.mxu0 %v196
    %374 = vmatprep.subr.bf16.mxu0 %v203
    %375 = vmatpush1.bf16.msra.mxu0 %v202
    %376 = vmatprep.subr.bf16.mxu0 0
    %377 = vmatpush1.bf16.msra.mxu0 0
    %378 = vmatprep.subr.bf16.mxu0 0
    %379 = vmatpush1.bf16.msra.mxu0 0
    %380 = vmatprep.subr.bf16.mxu0 0
    %381 = vmatpush1.bf16.msra.mxu0 0
    %382 = vmatprep.subr.bf16.mxu0 0
    %383 = vmatpush1.bf16.msra.mxu0 0
    %384 = vmatprep.subr.bf16.mxu0 0
    %385 = vmatpush1.bf16.msra.mxu0 0
    %386 = vmatprep.subr.bf16.mxu0 0
    %387 = vmatpush1.bf16.msra.mxu0 0
    %388 = vmatprep.subr.bf16.mxu0 0
    %389 = vmatpush1.bf16.msra.mxu0 0
    %390 = vmatprep.subr.bf16.mxu0 0
    %391 = vmatpush1.bf16.msra.mxu0 0
    %392 = vmatprep.subr.bf16.mxu0 0
    %393 = vmatpush1.bf16.msra.mxu0 0
    %394 = vmatprep.subr.bf16.mxu0 0
    %395 = vmatpush1.bf16.msra.mxu0 0
    %396 = vmatprep.subr.bf16.mxu0 0
    %397 = vmatpush1.bf16.msra.mxu0 0
    %398 = vmatprep.subr.bf16.mxu0 0
    %399 = vmatpush1.bf16.msra.mxu0 0
    %400 = vmatprep.mubr.bf16.mxu0 0
    %401 = vmatmul.mubr.bf16.gmra.mrb[0].mxu0 %v232
    %v402 = vpop.f32.mrb[0].mxu0
    %v403 = vadd.f32 0.0, %v402
    %v404 = vpop.f32.mrb[0].mxu0
    %v405 = vadd.f32 0.0, %v404
    %v406 = vpop.f32.mrb[0].mxu0
    %v407 = vadd.f32 0.0, %v406
    %v408 = vpop.f32.mrb[0].mxu0
    %v409 = vadd.f32 0.0, %v408
    %410 = vmatprep.mubr.bf16.mxu0 0
    %411 = vmatmul.mubr.bf16.gmra.mrb[0].mxu0 %v235
    %v412 = vpop.f32.mrb[0].mxu0
    %v413 = vadd.f32 0.0, %v412
    %v414 = vpop.f32.mrb[0].mxu0
    %v415 = vadd.f32 0.0, %v414
    %v416 = vpop.f32.mrb[0].mxu0
    %v417 = vadd.f32 0.0, %v416
    %v418 = vpop.f32.mrb[0].mxu0
    %v419 = vadd.f32 0.0, %v418
    %420 = vmatprep.mubr.bf16.mxu0 0
    %421 = vmatmul.mubr.bf16.gmra.mrb[0].mxu0 %v238
    %v422 = vpop.f32.mrb[0].mxu0
    %v423 = vadd.f32 0.0, %v422
    %v424 = vpop.f32.mrb[0].mxu0
    %v425 = vadd.f32 0.0, %v424
    %v426 = vpop.f32.mrb[0].mxu0
    %v427 = vadd.f32 0.0, %v426
    %v428 = vpop.f32.mrb[0].mxu0
    %v429 = vadd.f32 0.0, %v428
    %430 = vmatprep.mubr.bf16.mxu0 0
    %431 = vmatmul.mubr.bf16.gmra.mrb[0].mxu0 %v241
    %v432 = vpop.f32.mrb[0].mxu0
    %v433 = vadd.f32 0.0, %v432
    %v434 = vpop.f32.mrb[0].mxu0
    %v435 = vadd.f32 0.0, %v434
    %v436 = vpop.f32.mrb[0].mxu0
    %v437 = vadd.f32 0.0, %v436
    %v438 = vpop.f32.mrb[0].mxu0
    %v439 = vadd.f32 0.0, %v438
    %440 = vmatprep.mubr.bf16.mxu0 0
    %441 = vmatmul.mubr.bf16.gmra.mrb[0].mxu0 %v244
    %v442 = vpop.f32.mrb[0].mxu0
    %v443 = vadd.f32 0.0, %v442
    %v444 = vpop.f32.mrb[0].mxu0
    %v445 = vadd.f32 0.0, %v444
    %v446 = vpop.f32.mrb[0].mxu0
    %v447 = vadd.f32 0.0, %v446
    %v448 = vpop.f32.mrb[0].mxu0
    %v449 = vadd.f32 0.0, %v448
    %450 = vmatprep.mubr.bf16.mxu0 0
    %451 = vmatmul.mubr.bf16.gmra.mrb[0].mxu0 %v247
    %v452 = vpop.f32.mrb[0].mxu0
    %v453 = vadd.f32 0.0, %v452
    %v454 = vpop.f32.mrb[0].mxu0
    %v455 = vadd.f32 0.0, %v454
    %v456 = vpop.f32.mrb[0].mxu0
    %v457 = vadd.f32 0.0, %v456
    %v458 = vpop.f32.mrb[0].mxu0
    %v459 = vadd.f32 0.0, %v458
    %460 = vmatprep.mubr.bf16.mxu0 0
    %461 = vmatmul.mubr.bf16.gmra.mrb[0].mxu0 %v250
    %v462 = vpop.f32.mrb[0].mxu0
    %v463 = vadd.f32 0.0, %v462
    %v464 = vpop.f32.mrb[0].mxu0
    %v465 = vadd.f32 0.0, %v464
    %v466 = vpop.f32.mrb[0].mxu0
    %v467 = vadd.f32 0.0, %v466
    %v468 = vpop.f32.mrb[0].mxu0
    %v469 = vadd.f32 0.0, %v468
    %470 = vmatprep.mubr.bf16.mxu0 0
    %471 = vmatmul.mubr.bf16.gmra.mrb[0].mxu0 %v253
    %v472 = vpop.f32.mrb[0].mxu0
    %v473 = vadd.f32 0.0, %v472
    %v474 = vpop.f32.mrb[0].mxu0
    %v475 = vadd.f32 0.0, %v474
    %v476 = vpop.f32.mrb[0].mxu0
    %v477 = vadd.f32 0.0, %v476
    %v478 = vpop.f32.mrb[0].mxu0
    %v479 = vadd.f32 0.0, %v478
    %480 = vdwg.mxu0
    %481 = vmatprep.subr.bf16.mxu0 %v187
    %482 = vmatpush1.bf16.msra.mxu0 %v186
    %483 = vmatprep.subr.bf16.mxu0 %v193
    %484 = vmatpush1.bf16.msra.mxu0 %v192
    %485 = vmatprep.subr.bf16.mxu0 %v199
    %486 = vmatpush1.bf16.msra.mxu0 %v198
    %487 = vmatprep.subr.bf16.mxu0 %v205
    %488 = vmatpush1.bf16.msra.mxu0 %v204
    %489 = vmatprep.subr.bf16.mxu0 0
    %490 = vmatpush1.bf16.msra.mxu0 0
    %491 = vmatprep.subr.bf16.mxu0 0
    %492 = vmatpush1.bf16.msra.mxu0 0
    %493 = vmatprep.subr.bf16.mxu0 0
    %494 = vmatpush1.bf16.msra.mxu0 0
    %495 = vmatprep.subr.bf16.mxu0 0
    %496 = vmatpush1.bf16.msra.mxu0 0
    %497 = vmatprep.subr.bf16.mxu0 0
    %498 = vmatpush1.bf16.msra.mxu0 0
    %499 = vmatprep.subr.bf16.mxu0 0
    %500 = vmatpush1.bf16.msra.mxu0 0
    %501 = vmatprep.subr.bf16.mxu0 0
    %502 = vmatpush1.bf16.msra.mxu0 0
    %503 = vmatprep.subr.bf16.mxu0 0
    %504 = vmatpush1.bf16.msra.mxu0 0
    %505 = vmatprep.subr.bf16.mxu0 0
    %506 = vmatpush1.bf16.msra.mxu0 0
    %507 = vmatprep.subr.bf16.mxu0 0
    %508 = vmatpush1.bf16.msra.mxu0 0
    %509 = vmatprep.subr.bf16.mxu0 0
    %510 = vmatpush1.bf16.msra.mxu0 0
    %511 = vmatprep.subr.bf16.mxu0 0
    %512 = vmatpush1.bf16.msra.mxu0 0
    %513 = vmatprep.mubr.bf16.mxu0 0
    %514 = vmatmul.mubr.bf16.gmra.mrb[0].mxu0 %v232
    %v515 = vpop.f32.mrb[0].mxu0
    %v516 = vadd.f32 0.0, %v515
    %v517 = vpop.f32.mrb[0].mxu0
    %v518 = vadd.f32 0.0, %v517
    %v519 = vpop.f32.mrb[0].mxu0
    %v520 = vadd.f32 0.0, %v519
    %v521 = vpop.f32.mrb[0].mxu0
    %v522 = vadd.f32 0.0, %v521
    %523 = vmatprep.mubr.bf16.mxu0 0
    %524 = vmatmul.mubr.bf16.gmra.mrb[0].mxu0 %v235
    %v525 = vpop.f32.mrb[0].mxu0
    %v526 = vadd.f32 0.0, %v525
    %v527 = vpop.f32.mrb[0].mxu0
    %v528 = vadd.f32 0.0, %v527
    %v529 = vpop.f32.mrb[0].mxu0
    %v530 = vadd.f32 0.0, %v529
    %v531 = vpop.f32.mrb[0].mxu0
    %v532 = vadd.f32 0.0, %v531
    %533 = vmatprep.mubr.bf16.mxu0 0
    %534 = vmatmul.mubr.bf16.gmra.mrb[0].mxu0 %v238
    %v535 = vpop.f32.mrb[0].mxu0
    %v536 = vadd.f32 0.0, %v535
    %v537 = vpop.f32.mrb[0].mxu0
    %v538 = vadd.f32 0.0, %v537
    %v539 = vpop.f32.mrb[0].mxu0
    %v540 = vadd.f32 0.0, %v539
    %v541 = vpop.f32.mrb[0].mxu0
    %v542 = vadd.f32 0.0, %v541
    %543 = vmatprep.mubr.bf16.mxu0 0
    %544 = vmatmul.mubr.bf16.gmra.mrb[0].mxu0 %v241
    %v545 = vpop.f32.mrb[0].mxu0
    %v546 = vadd.f32 0.0, %v545
    %v547 = vpop.f32.mrb[0].mxu0
    %v548 = vadd.f32 0.0, %v547
    %v549 = vpop.f32.mrb[0].mxu0
    %v550 = vadd.f32 0.0, %v549
    %v551 = vpop.f32.mrb[0].mxu0
    %v552 = vadd.f32 0.0, %v551
    %553 = vmatprep.mubr.bf16.mxu0 0
    %554 = vmatmul.mubr.bf16.gmra.mrb[0].mxu0 %v244
    %v555 = vpop.f32.mrb[0].mxu0
    %v556 = vadd.f32 0.0, %v555
    %v557 = vpop.f32.mrb[0].mxu0
    %v558 = vadd.f32 0.0, %v557
    %v559 = vpop.f32.mrb[0].mxu0
    %v560 = vadd.f32 0.0, %v559
    %v561 = vpop.f32.mrb[0].mxu0
    %v562 = vadd.f32 0.0, %v561
    %563 = vmatprep.mubr.bf16.mxu0 0
    %564 = vmatmul.mubr.bf16.gmra.mrb[0].mxu0 %v247
    %v565 = vpop.f32.mrb[0].mxu0
    %v566 = vadd.f32 0.0, %v565
    %v567 = vpop.f32.mrb[0].mxu0
    %v568 = vadd.f32 0.0, %v567
    %v569 = vpop.f32.mrb[0].mxu0
    %v570 = vadd.f32 0.0, %v569
    %v571 = vpop.f32.mrb[0].mxu0
    %v572 = vadd.f32 0.0, %v571
    %573 = vmatprep.mubr.bf16.mxu0 0
    %574 = vmatmul.mubr.bf16.gmra.mrb[0].mxu0 %v250
    %v575 = vpop.f32.mrb[0].mxu0
    %v576 = vadd.f32 0.0, %v575
    %v577 = vpop.f32.mrb[0].mxu0
    %v578 = vadd.f32 0.0, %v577
    %v579 = vpop.f32.mrb[0].mxu0
    %v580 = vadd.f32 0.0, %v579
    %v581 = vpop.f32.mrb[0].mxu0
    %v582 = vadd.f32 0.0, %v581
    %583 = vmatprep.mubr.bf16.mxu0 0
    %584 = vmatmul.mubr.bf16.gmra.mrb[0].mxu0 %v253
    %v585 = vpop.f32.mrb[0].mxu0
    %v586 = vadd.f32 0.0, %v585
    %v587 = vpop.f32.mrb[0].mxu0
    %v588 = vadd.f32 0.0, %v587
    %v589 = vpop.f32.mrb[0].mxu0
    %v590 = vadd.f32 0.0, %v589
    %v591 = vpop.f32.mrb[0].mxu0
    %v592 = vadd.f32 0.0, %v591
    %593 = vdwg.mxu0
    %v594 = vpack.c.bf16 %v294, %v290
    %v595 = vpack.c.bf16 %v296, %v292
    %v596 = vpack.c.bf16 %v407, %v403
    %v597 = vpack.c.bf16 %v409, %v405
    %v598 = vpack.c.bf16 %v304, %v300
    %v599 = vpack.c.bf16 %v306, %v302
    %v600 = vpack.c.bf16 %v417, %v413
    %v601 = vpack.c.bf16 %v419, %v415
    %v602 = vpack.c.bf16 %v314, %v310
    %v603 = vpack.c.bf16 %v316, %v312
    %v604 = vpack.c.bf16 %v427, %v423
    %v605 = vpack.c.bf16 %v429, %v425
    %v606 = vpack.c.bf16 %v324, %v320
    %v607 = vpack.c.bf16 %v326, %v322
    %v608 = vpack.c.bf16 %v437, %v433
    %v609 = vpack.c.bf16 %v439, %v435
    %v610 = vpack.c.bf16 %v334, %v330
    %v611 = vpack.c.bf16 %v336, %v332
    %v612 = vpack.c.bf16 %v447, %v443
    %v613 = vpack.c.bf16 %v449, %v445
    %v614 = vpack.c.bf16 %v344, %v340
    %v615 = vpack.c.bf16 %v346, %v342
    %v616 = vpack.c.bf16 %v457, %v453
    %v617 = vpack.c.bf16 %v459, %v455
    %v618 = vpack.c.bf16 %v354, %v350
    %v619 = vpack.c.bf16 %v356, %v352
    %v620 = vpack.c.bf16 %v467, %v463
    %v621 = vpack.c.bf16 %v469, %v465
    %v622 = vpack.c.bf16 %v364, %v360
    %v623 = vpack.c.bf16 %v366, %v362
    %v624 = vpack.c.bf16 %v477, %v473
    %v625 = vpack.c.bf16 %v479, %v475
    %v658 = vunpack.c.l.b16 %v594
    %v659 = vunpack.c.l.b16 %v595
    %v660 = vunpack.c.l.b16 %v596
    %v661 = vunpack.c.l.b16 %v597
    %v662 = vunpack.c.h.b16 %v594
    %v663 = vunpack.c.h.b16 %v595
    %v664 = vunpack.c.h.b16 %v596
    %v665 = vunpack.c.h.b16 %v597
    %v666 = vunpack.c.l.b16 %v598
    %v667 = vunpack.c.l.b16 %v599
    %v668 = vunpack.c.l.b16 %v600
    %v669 = vunpack.c.l.b16 %v601
    %v670 = vunpack.c.h.b16 %v598
    %v671 = vunpack.c.h.b16 %v599
    %v672 = vunpack.c.h.b16 %v600
    %v673 = vunpack.c.h.b16 %v601
    %v674 = vunpack.c.l.b16 %v602
    %v675 = vunpack.c.l.b16 %v603
    %v676 = vunpack.c.l.b16 %v604
    %v677 = vunpack.c.l.b16 %v605
    %v678 = vunpack.c.h.b16 %v602
    %v679 = vunpack.c.h.b16 %v603
    %v680 = vunpack.c.h.b16 %v604
    %v681 = vunpack.c.h.b16 %v605
    %v682 = vunpack.c.l.b16 %v606
    %v683 = vunpack.c.l.b16 %v607
    %v684 = vunpack.c.l.b16 %v608
    %v685 = vunpack.c.l.b16 %v609
    %v686 = vunpack.c.h.b16 %v606
    %v687 = vunpack.c.h.b16 %v607
    %v688 = vunpack.c.h.b16 %v608
    %v689 = vunpack.c.h.b16 %v609
    %v690 = vunpack.c.l.b16 %v610
    %v691 = vunpack.c.l.b16 %v611
    %v692 = vunpack.c.l.b16 %v612
    %v693 = vunpack.c.l.b16 %v613
    %v694 = vunpack.c.h.b16 %v610
    %v695 = vunpack.c.h.b16 %v611
    %v696 = vunpack.c.h.b16 %v612
    %v697 = vunpack.c.h.b16 %v613
    %v698 = vunpack.c.l.b16 %v614
    %v699 = vunpack.c.l.b16 %v615
    %v700 = vunpack.c.l.b16 %v616
    %v701 = vunpack.c.l.b16 %v617
    %v702 = vunpack.c.h.b16 %v614
    %v703 = vunpack.c.h.b16 %v615
    %v704 = vunpack.c.h.b16 %v616
    %v705 = vunpack.c.h.b16 %v617
    %v706 = vunpack.c.l.b16 %v618
    %v707 = vunpack.c.l.b16 %v619
    %v708 = vunpack.c.l.b16 %v620
    %v709 = vunpack.c.l.b16 %v621
    %v710 = vunpack.c.h.b16 %v618
    %v711 = vunpack.c.h.b16 %v619
    %v712 = vunpack.c.h.b16 %v620
    %v713 = vunpack.c.h.b16 %v621
    %v714 = vunpack.c.l.b16 %v622
    %v715 = vunpack.c.l.b16 %v623
    %v716 = vunpack.c.l.b16 %v624
    %v717 = vunpack.c.l.b16 %v625
    %v718 = vunpack.c.h.b16 %v622
    %v719 = vunpack.c.h.b16 %v623
    %v720 = vunpack.c.h.b16 %v624
    %v721 = vunpack.c.h.b16 %v625
    %v722 = vpack.c.b16 %v659, %v658
    %v723 = vpack.c.b16 %v661, %v660
    %v724 = vpack.c.b16 %v663, %v662
    %v725 = vpack.c.b16 %v665, %v664
    %v726 = vpack.c.b16 %v667, %v666
    %v727 = vpack.c.b16 %v669, %v668
    %v728 = vpack.c.b16 %v671, %v670
    %v729 = vpack.c.b16 %v673, %v672
    %v730 = vpack.c.b16 %v675, %v674
    %v731 = vpack.c.b16 %v677, %v676
    %v732 = vpack.c.b16 %v679, %v678
    %v733 = vpack.c.b16 %v681, %v680
    %v734 = vpack.c.b16 %v683, %v682
    %v735 = vpack.c.b16 %v685, %v684
    %v736 = vpack.c.b16 %v687, %v686
    %v737 = vpack.c.b16 %v689, %v688
    %v738 = vpack.c.b16 %v691, %v690
    %v739 = vpack.c.b16 %v693, %v692
    %v740 = vpack.c.b16 %v695, %v694
    %v741 = vpack.c.b16 %v697, %v696
    %v742 = vpack.c.b16 %v699, %v698
    %v743 = vpack.c.b16 %v701, %v700
    %v744 = vpack.c.b16 %v703, %v702
    %v745 = vpack.c.b16 %v705, %v704
    %v746 = vpack.c.b16 %v707, %v706
    %v747 = vpack.c.b16 %v709, %v708
    %v748 = vpack.c.b16 %v711, %v710
    %v749 = vpack.c.b16 %v713, %v712
    %v750 = vpack.c.b16 %v715, %v714
    %v751 = vpack.c.b16 %v717, %v716
    %v752 = vpack.c.b16 %v719, %v718
    %v753 = vpack.c.b16 %v721, %v720
    %786 = vst [vmem:[#allocation5] sm:$0xff] %v722
    %787 = vst [vmem:[#allocation5 + $0x8] sm:$0xff] %v723
    %788 = vst [vmem:[#allocation5 + $0x10] sm:$0xff] %v724
    %789 = vst [vmem:[#allocation5 + $0x18] sm:$0xff] %v725
    %790 = vst [vmem:[#allocation5 + $0x20] sm:$0xff] %v726
    %791 = vst [vmem:[#allocation5 + $0x28] sm:$0xff] %v727
    %792 = vst [vmem:[#allocation5 + $0x30] sm:$0xff] %v728
    %793 = vst [vmem:[#allocation5 + $0x38] sm:$0xff] %v729
    %794 = vst [vmem:[#allocation5 + $0x40] sm:$0xff] %v730
    %795 = vst [vmem:[#allocation5 + $0x48] sm:$0xff] %v731
    %796 = vst [vmem:[#allocation5 + $0x50] sm:$0xff] %v732
    %797 = vst [vmem:[#allocation5 + $0x58] sm:$0xff] %v733
    %798 = vst [vmem:[#allocation5 + $0x60] sm:$0xff] %v734
    %799 = vst [vmem:[#allocation5 + $0x68] sm:$0xff] %v735
    %800 = vst [vmem:[#allocation5 + $0x70] sm:$0xff] %v736
    %801 = vst [vmem:[#allocation5 + $0x78] sm:$0xff] %v737
    %802 = vst [vmem:[#allocation5 + $0x80] sm:$0xff] %v738
    %803 = vst [vmem:[#allocation5 + $0x88] sm:$0xff] %v739
    %804 = vst [vmem:[#allocation5 + $0x90] sm:$0xff] %v740
    %805 = vst [vmem:[#allocation5 + $0x98] sm:$0xff] %v741
    %806 = vst [vmem:[#allocation5 + $0xa0] sm:$0xff] %v742
    %807 = vst [vmem:[#allocation5 + $0xa8] sm:$0xff] %v743
    %808 = vst [vmem:[#allocation5 + $0xb0] sm:$0xff] %v744
    %809 = vst [vmem:[#allocation5 + $0xb8] sm:$0xff] %v745
    %810 = vst [vmem:[#allocation5 + $0xc0] sm:$0xff] %v746
    %811 = vst [vmem:[#allocation5 + $0xc8] sm:$0xff] %v747
    %812 = vst [vmem:[#allocation5 + $0xd0] sm:$0xff] %v748
    %813 = vst [vmem:[#allocation5 + $0xd8] sm:$0xff] %v749
    %814 = vst [vmem:[#allocation5 + $0xe0] sm:$0xff] %v750
    %815 = vst [vmem:[#allocation5 + $0xe8] sm:$0xff] %v751
    %816 = vst [vmem:[#allocation5 + $0xf0] sm:$0xff] %v752
    %817 = vst [vmem:[#allocation5 + $0xf8] sm:$0xff] %v753
    %818 = vst [vmem:[#allocation6] sm:$0xff] %v516
    %819 = vst [vmem:[#allocation6 + $0x8] sm:$0xff] %v518
    %820 = vst [vmem:[#allocation6 + $0x10] sm:$0xff] %v520
    %821 = vst [vmem:[#allocation6 + $0x18] sm:$0xff] %v522
    %822 = vst [vmem:[#allocation6 + $0x20] sm:$0xff] %v526
    %823 = vst [vmem:[#allocation6 + $0x28] sm:$0xff] %v528
    %824 = vst [vmem:[#allocation6 + $0x30] sm:$0xff] %v530
    %825 = vst [vmem:[#allocation6 + $0x38] sm:$0xff] %v532
    %826 = vst [vmem:[#allocation6 + $0x40] sm:$0xff] %v536
    %827 = vst [vmem:[#allocation6 + $0x48] sm:$0xff] %v538
    %828 = vst [vmem:[#allocation6 + $0x50] sm:$0xff] %v540
    %829 = vst [vmem:[#allocation6 + $0x58] sm:$0xff] %v542
    %830 = vst [vmem:[#allocation6 + $0x60] sm:$0xff] %v546
    %831 = vst [vmem:[#allocation6 + $0x68] sm:$0xff] %v548
    %832 = vst [vmem:[#allocation6 + $0x70] sm:$0xff] %v550
    %833 = vst [vmem:[#allocation6 + $0x78] sm:$0xff] %v552
    %834 = vst [vmem:[#allocation6 + $0x80] sm:$0xff] %v556
    %835 = vst [vmem:[#allocation6 + $0x88] sm:$0xff] %v558
    %836 = vst [vmem:[#allocation6 + $0x90] sm:$0xff] %v560
    %837 = vst [vmem:[#allocation6 + $0x98] sm:$0xff] %v562
    %838 = vst [vmem:[#allocation6 + $0xa0] sm:$0xff] %v566
    %839 = vst [vmem:[#allocation6 + $0xa8] sm:$0xff] %v568
    %840 = vst [vmem:[#allocation6 + $0xb0] sm:$0xff] %v570
    %841 = vst [vmem:[#allocation6 + $0xb8] sm:$0xff] %v572
    %842 = vst [vmem:[#allocation6 + $0xc0] sm:$0xff] %v576
    %843 = vst [vmem:[#allocation6 + $0xc8] sm:$0xff] %v578
    %844 = vst [vmem:[#allocation6 + $0xd0] sm:$0xff] %v580
    %845 = vst [vmem:[#allocation6 + $0xd8] sm:$0xff] %v582
    %846 = vst [vmem:[#allocation6 + $0xe0] sm:$0xff] %v586
    %847 = vst [vmem:[#allocation6 + $0xe8] sm:$0xff] %v588
    %848 = vst [vmem:[#allocation6 + $0xf0] sm:$0xff] %v590
    %849 = vst [vmem:[#allocation6 + $0xf8] sm:$0xff] %v592
    // Predicated region
    $region14: #{tpu_custom_call.1} parent=1 // pred_check
      _
    $region15: #{tpu_custom_call.1} parent=1 // pred_check_branch
      %851 = sbr.rel (0) target = $region17
    $region16: #{tpu_custom_call.1} parent=1 // pred_region
      %s853 = ssub.s32 4096, 4096
      %854 = vsyncadd [#allocation4], %s853
      %s855 = sshll.u32 [#allocation5], 4
      %s856 = int_to_ptr.vmem [resolvable:$true] %s855
      %861 = dma.vmem_to_hbm [thread:$0]  %s856, 4096, %s2, [#allocation4], 256, 256, 16
    $region17: #{tpu_custom_call.1} parent=1 // pred_fallthru
      _
    // Predicated region
    $region18: #{tpu_custom_call.1} parent=1 // pred_check
      _
    $region19: #{tpu_custom_call.1} parent=1 // pred_check_branch
      %863 = sbr.rel (0) target = $region21
    $region20: #{tpu_custom_call.1} parent=1 // pred_region
      %s865 = ssub.s32 4096, 4096
      %866 = vsyncadd [#allocation7], %s865
      %s867 = sshll.u32 [#allocation6], 4
      %s868 = int_to_ptr.vmem [resolvable:$true] %s867
      %873 = dma.vmem_to_hbm [thread:$0]  %s868, 4096, %s3, [#allocation7], 256, 256, 16
    $region21: #{tpu_custom_call.1} parent=1 // pred_fallthru
      _
    // Predicated region
    $region22: #{tpu_custom_call.1} parent=1 // pred_check
      _
    $region23: #{tpu_custom_call.1} parent=1 // pred_check_branch
      %875 = sbr.rel (0) target = $region25
    $region24: #{tpu_custom_call.1} parent=1 // pred_region
      %876 = dma.done [#allocation4], 4096
    $region25: #{tpu_custom_call.1} parent=1 // pred_fallthru
      _
    // Predicated region
    $region26: #{tpu_custom_call.1} parent=1 // pred_check
      _
    $region27: #{tpu_custom_call.1} parent=1 // pred_check_branch
      %878 = sbr.rel (0) target = $region29
    $region28: #{tpu_custom_call.1} parent=1 // pred_region
      %879 = dma.done [#allocation7], 4096
    $region29: #{tpu_custom_call.1} parent=1 // pred_fallthru
      _
    %880 = vsyncpa [#allocation3], 1
    %881 = vsyncpa [#allocation4], 1
    %882 = vsyncpa [#allocation7], 1

</llo_original>
